<compile_context>
chip_gen: v7x
topology: tpu7x:2x2x1
jax: 0.10.0
libtpu: 0.0.40
codegen_flags: <defaults>
</compile_context>

<pallas_src>
import jax
import jax.numpy as jnp
from jax.experimental import pallas as pl
from jax.experimental.pallas import tpu as pltpu

FEAT = 128      # lane-dense padded feature width
N_LAYERS = 5    # fused layer count (in-blk, hid-blk, hidden, hidden2, out)


def _round_up(n, m):
    return ((n + m - 1) // m) * m


def _critic_kernel(x_ref, w_ref, b_ref, o_ref):
    """x_ref: (TILE_B,128) padded [x|y|0..]; w_ref: (5,128,128); b_ref: (8,128);
    o_ref: (TILE_B,128) lane-dense output slab (column 0 is the Q-value)."""
    b = b_ref[...]          # load biases once per tile
    x = x_ref[...]

    # layer 0: fused input_layer ⊕ input_action (block-diagonal), no activation
    z = jnp.dot(x, w_ref[0], preferred_element_type=jnp.float32) + b[0:1, :]
    # layer 1: fused hidden_layer ⊕ hidden_action (block-diagonal), ReLU
    z = jnp.maximum(
        jnp.dot(z, w_ref[1], preferred_element_type=jnp.float32) + b[1:2, :], 0.0)
    # layer 2: hidden (64x64).  The PyTorch concat([x2, y2], dim=1) is implicit
    # in the column layout of z (cols 0:32 = x-branch, 32:64 = y-branch).
    z = jnp.maximum(
        jnp.dot(z, w_ref[2], preferred_element_type=jnp.float32) + b[2:3, :], 0.0)
    # layer 3: hidden2 (64x64), ReLU
    z = jnp.maximum(
        jnp.dot(z, w_ref[3], preferred_element_type=jnp.float32) + b[3:4, :], 0.0)
    # layer 4: output_layer (64x1, padded to 128 lanes -> unmasked stores)
    o_ref[...] = jnp.dot(z, w_ref[4], preferred_element_type=jnp.float32) + b[4:5, :]


def pack_params(params, input_shape, action_shape):
    """Pack the 14 per-layer tensors into one weight slab and one bias slab."""
    (w_in, b_in, w_act, b_act, w_hx, b_hx, w_hy, b_hy,
     w_h, b_h, w_h2, b_h2, w_o, b_o) = params
    S, A = input_shape, action_shape
    W = jnp.zeros((N_LAYERS, FEAT, FEAT), jnp.float32)
    B = jnp.zeros((8, FEAT), jnp.float32)

    # layer 0: block-diag of input_layer (S,32) and input_action (A,32)
    W = W.at[0, 0:S, 0:32].set(w_in)
    W = W.at[0, S:S + A, 32:64].set(w_act)
    B = B.at[0, 0:32].set(b_in.reshape(-1))
    B = B.at[0, 32:64].set(b_act.reshape(-1))
    # layer 1: block-diag of hidden_layer and hidden_action (32,32) each
    W = W.at[1, 0:32, 0:32].set(w_hx)
    W = W.at[1, 32:64, 32:64].set(w_hy)
    B = B.at[1, 0:32].set(b_hx.reshape(-1))
    B = B.at[1, 32:64].set(b_hy.reshape(-1))
    # layer 2: hidden (64,64)
    W = W.at[2, 0:64, 0:64].set(w_h)
    B = B.at[2, 0:64].set(b_h.reshape(-1))
    # layer 3: hidden2 (64,64)
    W = W.at[3, 0:64, 0:64].set(w_h2)
    B = B.at[3, 0:64].set(b_h2.reshape(-1))
    # layer 4: output (64,1) in lane 0 of a 128-wide slab
    W = W.at[4, 0:64, 0:1].set(w_o)
    B = B.at[4, 0:1].set(b_o.reshape(-1))
    return W, B


def critic_forward(x, y, packed_w, packed_b, *, tile_b=256):
    """x: (B, S) f32, y: (B, A) f32 -> (B, 1) f32."""
    Bsz = x.shape[0]
    S, A = x.shape[1], y.shape[1]
    assert S + A <= FEAT

    tile_b = min(tile_b, _round_up(Bsz, 8))          # small batches: one tile
    Bp = _round_up(Bsz, tile_b)                      # batch padded to tile mult.

    # Host-side concat + zero-pad to the 128-lane slab (no concat in-kernel).
    x_pad = jnp.zeros((Bp, FEAT), jnp.float32)
    x_pad = x_pad.at[:Bsz, 0:S].set(x)
    x_pad = x_pad.at[:Bsz, S:S + A].set(y)

    grid = (Bp // tile_b,)
    flops = 2 * Bp * N_LAYERS * FEAT * FEAT
    bytes_accessed = 4 * (x_pad.size + packed_w.size + packed_b.size + Bp * FEAT)

    out = pl.pallas_call(
        _critic_kernel,
        out_shape=jax.ShapeDtypeStruct((Bp, FEAT), jnp.float32),
        grid_spec=pltpu.PrefetchScalarGridSpec(
            num_scalar_prefetch=0,
            grid=grid,
            in_specs=[
                pl.BlockSpec((tile_b, FEAT), lambda i: (i, 0)),          # activations
                pl.BlockSpec((N_LAYERS, FEAT, FEAT), lambda i: (0, 0, 0)),  # weight slab
                pl.BlockSpec((8, FEAT), lambda i: (0, 0)),               # bias slab
            ],
            out_specs=pl.BlockSpec((tile_b, FEAT), lambda i: (i, 0)),
        ),
        compiler_params=pltpu.CompilerParams(
            dimension_semantics=("parallel",),
            vmem_limit_bytes=32 * 1024 * 1024,
        ),
        cost_estimate=pl.CostEstimate(
            flops=flops, transcendentals=0, bytes_accessed=bytes_accessed),
    )(x_pad, packed_w, packed_b)

    # Lane-dense slab -> (B, 1) critic value.
    return out[:Bsz, :1]


def init_params(key, input_shape, action_shape):
    """Deterministic init mirroring nn.Linear default (U[-1/sqrt(fan_in), +...])."""
    dims = [
        (input_shape, 32),   # input_layer
        (action_shape, 32),  # input_action
        (32, 32),            # hidden_layer
        (32, 32),            # hidden_action
        (64, 64),            # hidden
        (64, 64),            # hidden2
        (64, 1),             # output_layer
    ]
    params = []
    for fan_in, fan_out in dims:
        key, kw, kb = jax.random.split(key, 3)
        bound = 1.0 / jnp.sqrt(jnp.float32(fan_in))
        w = jax.random.uniform(kw, (fan_in, fan_out), jnp.float32, -bound, bound)
        b = jax.random.uniform(kb, (1, fan_out), jnp.float32, -bound, bound)
        params.extend([w, b])
    return params


if __name__ == "__main__":
    INPUT_SHAPE = 16    # state dimension
    ACTION_SHAPE = 4    # action dimension
    BATCH = 8

    key = jax.random.PRNGKey(0)
    key, kx, ky = jax.random.split(key, 3)
    x = jax.random.normal(kx, (BATCH, INPUT_SHAPE), jnp.float32)
    y = jax.random.normal(ky, (BATCH, ACTION_SHAPE), jnp.float32)

    params = init_params(key, INPUT_SHAPE, ACTION_SHAPE)
    packed_w, packed_b = pack_params(params, INPUT_SHAPE, ACTION_SHAPE)

    out = critic_forward(x, y, packed_w, packed_b)
    out = jax.block_until_ready(out)
    assert out.shape == (BATCH, 1) and out.dtype == jnp.float32

    # Pure-JAX reference of the original (unfused) module math.
    def ref(x, y, p):
        (w_in, b_in, w_act, b_act, w_hx, b_hx, w_hy, b_hy,
         w_h, b_h, w_h2, b_h2, w_o, b_o) = p
        x1 = x @ w_in + b_in
        y1 = y @ w_act + b_act
        x2 = jax.nn.relu(x1 @ w_hx + b_hx)
        y2 = jax.nn.relu(y1 @ w_hy + b_hy)
        c = jnp.concatenate([x2, y2], axis=1)
        h = jax.nn.relu(c @ w_h + b_h)
        h2 = jax.nn.relu(h @ w_h2 + b_h2)
        return h2 @ w_o + b_o

    expected = ref(x, y, params)
    assert jnp.allclose(out, expected, atol=1e-4, rtol=1e-4), (
        jnp.max(jnp.abs(out - expected)))

    # TODO(synk): for large training batches on v6e, cast activations + weight
    # slab to bfloat16 (keep the f32 MXU accumulator) to halve HBM traffic.
    print("KERNEL_OK")
</pallas_src>

<mosaic_0001>
module attributes {stable_mosaic.version = 11 : i64} {
  func.func @_critic_kernel(%arg0: i32, %arg1: memref<8x128xf32, #tpu.memory_space<vmem>>, %arg2: memref<5x128x128xf32, #tpu.memory_space<vmem>>, %arg3: memref<8x128xf32, #tpu.memory_space<vmem>>, %arg4: memref<8x128xf32, #tpu.memory_space<vmem>>) attributes {dimension_semantics = [#tpu.dimension_semantics<parallel>], iteration_bounds = array<i64: 1>, scalar_prefetch = 0 : i64, scratch_operands = 0 : i64, tpu.core_type = #tpu.core_type<tc>, window_params = [{transform_indices = @transform_0, window_bounds = array<i64: 8, 128>}, {pipeline_mode = #tpu.pipeline_mode<synchronous>, transform_indices = @transform_1, window_bounds = array<i64: 5, 128, 128>}, {pipeline_mode = #tpu.pipeline_mode<synchronous>, transform_indices = @transform_2, window_bounds = array<i64: 8, 128>}, {transform_indices = @transform_3, window_bounds = array<i64: 8, 128>}]} {
    %c0 = arith.constant 0 : index
    %c0_0 = arith.constant 0 : index
    %0 = vector.load %arg3[%c0, %c0_0] : memref<8x128xf32, #tpu.memory_space<vmem>>, vector<8x128xf32>
    %c0_1 = arith.constant 0 : index
    %c0_2 = arith.constant 0 : index
    %1 = vector.load %arg1[%c0_1, %c0_2] : memref<8x128xf32, #tpu.memory_space<vmem>>, vector<8x128xf32>
    %c0_3 = arith.constant 0 : index
    %c0_4 = arith.constant 0 : index
    %c0_5 = arith.constant 0 : index
    %2 = vector.load %arg2[%c0_3, %c0_4, %c0_5] : memref<5x128x128xf32, #tpu.memory_space<vmem>>, vector<1x128x128xf32>
    %3 = vector.shape_cast %2 : vector<1x128x128xf32> to vector<128x128xf32>
    %cst = arith.constant dense<0.000000e+00> : vector<8x128xf32>
    %4 = tpu.matmul %1, %3, %cst {dimension_numbers = #tpu.dot_dimension_numbers<[1], [0], [0], [1], [0, 0, 1, 1], [], []>} : vector<8x128xf32>, vector<128x128xf32>, vector<8x128xf32> -> vector<8x128xf32>
    %5 = vector.extract_strided_slice %0 {offsets = [0, 0], sizes = [1, 128], strides = [1, 1]} : vector<8x128xf32> to vector<1x128xf32>
    %6 = vector.broadcast %5 : vector<1x128xf32> to vector<8x128xf32>
    %7 = arith.addf %4, %6 : vector<8x128xf32>
    %c1 = arith.constant 1 : index
    %c0_6 = arith.constant 0 : index
    %c0_7 = arith.constant 0 : index
    %8 = vector.load %arg2[%c1, %c0_6, %c0_7] : memref<5x128x128xf32, #tpu.memory_space<vmem>>, vector<1x128x128xf32>
    %9 = vector.shape_cast %8 : vector<1x128x128xf32> to vector<128x128xf32>
    %cst_8 = arith.constant dense<0.000000e+00> : vector<8x128xf32>
    %10 = tpu.matmul %7, %9, %cst_8 {dimension_numbers = #tpu.dot_dimension_numbers<[1], [0], [0], [1], [0, 0, 1, 1], [], []>} : vector<8x128xf32>, vector<128x128xf32>, vector<8x128xf32> -> vector<8x128xf32>
    %11 = vector.extract_strided_slice %0 {offsets = [1, 0], sizes = [1, 128], strides = [1, 1]} : vector<8x128xf32> to vector<1x128xf32>
    %12 = vector.broadcast %11 : vector<1x128xf32> to vector<8x128xf32>
    %13 = arith.addf %10, %12 : vector<8x128xf32>
    %cst_9 = arith.constant 0.000000e+00 : f32
    %14 = vector.broadcast %cst_9 : f32 to vector<8x128xf32>
    %15 = arith.maximumf %13, %14 : vector<8x128xf32>
    %c2 = arith.constant 2 : index
    %c0_10 = arith.constant 0 : index
    %c0_11 = arith.constant 0 : index
    %16 = vector.load %arg2[%c2, %c0_10, %c0_11] : memref<5x128x128xf32, #tpu.memory_space<vmem>>, vector<1x128x128xf32>
    %17 = vector.shape_cast %16 : vector<1x128x128xf32> to vector<128x128xf32>
    %cst_12 = arith.constant dense<0.000000e+00> : vector<8x128xf32>
    %18 = tpu.matmul %15, %17, %cst_12 {dimension_numbers = #tpu.dot_dimension_numbers<[1], [0], [0], [1], [0, 0, 1, 1], [], []>} : vector<8x128xf32>, vector<128x128xf32>, vector<8x128xf32> -> vector<8x128xf32>
    %19 = vector.extract_strided_slice %0 {offsets = [2, 0], sizes = [1, 128], strides = [1, 1]} : vector<8x128xf32> to vector<1x128xf32>
    %20 = vector.broadcast %19 : vector<1x128xf32> to vector<8x128xf32>
    %21 = arith.addf %18, %20 : vector<8x128xf32>
    %cst_13 = arith.constant 0.000000e+00 : f32
    %22 = vector.broadcast %cst_13 : f32 to vector<8x128xf32>
    %23 = arith.maximumf %21, %22 : vector<8x128xf32>
    %c3 = arith.constant 3 : index
    %c0_14 = arith.constant 0 : index
    %c0_15 = arith.constant 0 : index
    %24 = vector.load %arg2[%c3, %c0_14, %c0_15] : memref<5x128x128xf32, #tpu.memory_space<vmem>>, vector<1x128x128xf32>
    %25 = vector.shape_cast %24 : vector<1x128x128xf32> to vector<128x128xf32>
    %cst_16 = arith.constant dense<0.000000e+00> : vector<8x128xf32>
    %26 = tpu.matmul %23, %25, %cst_16 {dimension_numbers = #tpu.dot_dimension_numbers<[1], [0], [0], [1], [0, 0, 1, 1], [], []>} : vector<8x128xf32>, vector<128x128xf32>, vector<8x128xf32> -> vector<8x128xf32>
    %27 = vector.extract_strided_slice %0 {offsets = [3, 0], sizes = [1, 128], strides = [1, 1]} : vector<8x128xf32> to vector<1x128xf32>
    %28 = vector.broadcast %27 : vector<1x128xf32> to vector<8x128xf32>
    %29 = arith.addf %26, %28 : vector<8x128xf32>
    %cst_17 = arith.constant 0.000000e+00 : f32
    %30 = vector.broadcast %cst_17 : f32 to vector<8x128xf32>
    %31 = arith.maximumf %29, %30 : vector<8x128xf32>
    %c4 = arith.constant 4 : index
    %c0_18 = arith.constant 0 : index
    %c0_19 = arith.constant 0 : index
    %32 = vector.load %arg2[%c4, %c0_18, %c0_19] : memref<5x128x128xf32, #tpu.memory_space<vmem>>, vector<1x128x128xf32>
    %33 = vector.shape_cast %32 : vector<1x128x128xf32> to vector<128x128xf32>
    %cst_20 = arith.constant dense<0.000000e+00> : vector<8x128xf32>
    %34 = tpu.matmul %31, %33, %cst_20 {dimension_numbers = #tpu.dot_dimension_numbers<[1], [0], [0], [1], [0, 0, 1, 1], [], []>} : vector<8x128xf32>, vector<128x128xf32>, vector<8x128xf32> -> vector<8x128xf32>
    %35 = vector.extract_strided_slice %0 {offsets = [4, 0], sizes = [1, 128], strides = [1, 1]} : vector<8x128xf32> to vector<1x128xf32>
    %36 = vector.broadcast %35 : vector<1x128xf32> to vector<8x128xf32>
    %37 = arith.addf %34, %36 : vector<8x128xf32>
    %c0_21 = arith.constant 0 : index
    %c0_22 = arith.constant 0 : index
    %38 = vector.load %arg4[%c0_21, %c0_22] : memref<8x128xf32, #tpu.memory_space<vmem>>, vector<8x128xf32>
    tpu.vector_store %arg4[%c0_21, %c0_22], %37 {strides = array<i32>} : memref<8x128xf32, #tpu.memory_space<vmem>>, vector<8x128xf32>,
    return
  }
  func.func @transform_0(%arg0: i32) -> (i32, i32) {
    %c0_i32 = arith.constant 0 : i32
    %c0_i32_0 = arith.constant 0 : i32
    return %arg0, %c0_i32 : i32, i32
  }
  func.func @transform_1(%arg0: i32) -> (i32, i32, i32) {
    %c0_i32 = arith.constant 0 : i32
    %c0_i32_0 = arith.constant 0 : i32
    %c0_i32_1 = arith.constant 0 : i32
    %c0_i32_2 = arith.constant 0 : i32
    return %c0_i32, %c0_i32_0, %c0_i32_1 : i32, i32, i32
  }
  func.func @transform_2(%arg0: i32) -> (i32, i32) {
    %c0_i32 = arith.constant 0 : i32
    %c0_i32_0 = arith.constant 0 : i32
    %c0_i32_1 = arith.constant 0 : i32
    return %c0_i32, %c0_i32_0 : i32, i32
  }
  func.func @transform_3(%arg0: i32) -> (i32, i32) {
    %c0_i32 = arith.constant 0 : i32
    %c0_i32_0 = arith.constant 0 : i32
    return %arg0, %c0_i32 : i32, i32
  }
}

</mosaic_0001>

<llo_original>
// kernel: tpu_custom_call.1
$region0: #{tpu_custom_call.1}
  #allocation0 [shape = 'u32[]', space=smem, size = 0x4, offset = 0x4, fixed_abs, tag = 'smem constant byte address 0x4 - core index']
  #allocation1 [shape = 'u32[144,128]{1,0:T(1,128)}', space=vmem, size = 0x12000, scoped, tag = 'internal scratch']
  %s0 = inlined_call_operand.hbm [shape: f32[8,128], index: 0, kind: input, shape index: {}]
  %s1 = inlined_call_operand.hbm [shape: f32[5,128,128], index: 1, kind: input, shape index: {}]
  %s2 = inlined_call_operand.hbm [shape: f32[8,128], index: 2, kind: input, shape index: {}]
  %s3 = inlined_call_operand.hbm [shape: f32[8,128], index: 3, kind: output, shape index: {}]
  %s4 = sld [smem:[#allocation0]]
  $region34: #{tpu_custom_call.1} parent=0
    _
  %s6 = ssub.s32 1, %s4
  %s7 = scalar_select 0, %s6, %s4
  $region1: #{tpu_custom_call.1} parent=0
    #allocation2 [shape = 'u8[4096]{0}', space=vmem, size = 0x1000, scoped, tag = 'input window, operand 0, single buffered']
    #allocation3 [shape = 's32[1]{0}', space=sflag, size = 0x4, scoped, tag = 'scoped memory for tpu_custom_call.1']
    #allocation4 [shape = 's32[1]{0}', space=sflag, size = 0x4, scoped, tag = 'scoped memory for tpu_custom_call.1']
    #allocation5 [shape = 'u8[327680]{0}', space=vmem, size = 0x50000, scoped, tag = 'input window, operand 1, single buffered']
    #allocation6 [shape = 's32[1]{0}', space=sflag, size = 0x4, scoped, tag = 'scoped memory for tpu_custom_call.1']
    #allocation7 [shape = 'u8[4096]{0}', space=vmem, size = 0x1000, scoped, tag = 'input window, operand 2, single buffered']
    #allocation8 [shape = 'u8[4096]{0}', space=vmem, size = 0x1000, scoped, tag = 'output window, operand 0, single buffered']
    %8 = vsyncpa [#allocation3], 0
    %9 = vsyncpa [#allocation6], 0
    %10 = vsyncpa [#allocation4], 0
    // Predicated region
    $region2: #{tpu_custom_call.1} parent=1 // pred_check
      _
    $region3: #{tpu_custom_call.1} parent=1 // pred_check_branch
      %12 = sbr.rel (0) target = $region5
    $region4: #{tpu_custom_call.1} parent=1 // pred_region
      %s14 = ssub.s32 128, 128
      %15 = vsyncadd [#allocation3], %s14
      %s17 = sshll.u32 [#allocation2], 4
      %s18 = int_to_ptr.vmem [resolvable:$true] %s17
      %20 = dma.hbm_to_vmem [thread:$0]  %s0, 128, %s18, [#allocation3]
    $region5: #{tpu_custom_call.1} parent=1 // pred_fallthru
      _
    // Predicated region
    $region6: #{tpu_custom_call.1} parent=1 // pred_check
      _
    $region7: #{tpu_custom_call.1} parent=1 // pred_check_branch
      %22 = sbr.rel (0) target = $region9
    $region8: #{tpu_custom_call.1} parent=1 // pred_region
      %s24 = ssub.s32 10240, 10240
      %25 = vsyncadd [#allocation6], %s24
      %s26 = sshll.u32 [#allocation5], 4
      %s27 = int_to_ptr.vmem [resolvable:$true] %s26
      %32 = dma.hbm_to_vmem [thread:$0]  %s1, 10240, %s27, [#allocation6], 128, 128, 8
    $region9: #{tpu_custom_call.1} parent=1 // pred_fallthru
      _
    // Predicated region
    $region10: #{tpu_custom_call.1} parent=1 // pred_check
      _
    $region11: #{tpu_custom_call.1} parent=1 // pred_check_branch
      %34 = sbr.rel (0) target = $region13
    $region12: #{tpu_custom_call.1} parent=1 // pred_region
      %s36 = ssub.s32 128, 128
      %37 = vsyncadd [#allocation6], %s36
      %s39 = sshll.u32 [#allocation7], 4
      %s40 = int_to_ptr.vmem [resolvable:$true] %s39
      %42 = dma.hbm_to_vmem [thread:$0]  %s2, 128, %s40, [#allocation6]
    $region13: #{tpu_custom_call.1} parent=1 // pred_fallthru
      _
    // Predicated region
    $region14: #{tpu_custom_call.1} parent=1 // pred_check
      _
    $region15: #{tpu_custom_call.1} parent=1 // pred_check_branch
      %44 = sbr.rel (0) target = $region17
    $region16: #{tpu_custom_call.1} parent=1 // pred_region
      %45 = dma.done [#allocation3], 128
    $region17: #{tpu_custom_call.1} parent=1 // pred_fallthru
      _
    // Predicated region
    $region18: #{tpu_custom_call.1} parent=1 // pred_check
      _
    $region19: #{tpu_custom_call.1} parent=1 // pred_check_branch
      %47 = sbr.rel (0) target = $region21
    $region20: #{tpu_custom_call.1} parent=1 // pred_region
      %48 = dma.done [#allocation6], 10240
    $region21: #{tpu_custom_call.1} parent=1 // pred_fallthru
      _
    // Predicated region
    $region22: #{tpu_custom_call.1} parent=1 // pred_check
      _
    $region23: #{tpu_custom_call.1} parent=1 // pred_check_branch
      %50 = sbr.rel (0) target = $region25
    $region24: #{tpu_custom_call.1} parent=1 // pred_region
      %51 = dma.done [#allocation6], 128
    $region25: #{tpu_custom_call.1} parent=1 // pred_fallthru
      _
    %v52 = vld [vmem:[#allocation7] sm:$0xff]
    %v53 = vld [vmem:[#allocation2] sm:$0xff]
    %v54 = vld [vmem:[#allocation5] sm:$0xff]
    %v55 = vld [vmem:[#allocation5 + $0x8] sm:$0xff]
    %v56 = vld [vmem:[#allocation5 + $0x10] sm:$0xff]
    %v57 = vld [vmem:[#allocation5 + $0x18] sm:$0xff]
    %v58 = vld [vmem:[#allocation5 + $0x20] sm:$0xff]
    %v59 = vld [vmem:[#allocation5 + $0x28] sm:$0xff]
    %v60 = vld [vmem:[#allocation5 + $0x30] sm:$0xff]
    %v61 = vld [vmem:[#allocation5 + $0x38] sm:$0xff]
    %v62 = vld [vmem:[#allocation5 + $0x40] sm:$0xff]
    %v63 = vld [vmem:[#allocation5 + $0x48] sm:$0xff]
    %v64 = vld [vmem:[#allocation5 + $0x50] sm:$0xff]
    %v65 = vld [vmem:[#allocation5 + $0x58] sm:$0xff]
    %v66 = vld [vmem:[#allocation5 + $0x60] sm:$0xff]
    %v67 = vld [vmem:[#allocation5 + $0x68] sm:$0xff]
    %v68 = vld [vmem:[#allocation5 + $0x70] sm:$0xff]
    %v69 = vld [vmem:[#allocation5 + $0x78] sm:$0xff]
    %v70 = vlaneseq
    %v71 = vshrl.u32 %v70, 7
    %v72 = vsub.s32 0, %v71
    %v73 = vrot.slane %v52, %v72
    %74 = vmatprep.subr.mxu0 0.0
    %75 = vmatpush1.msra.mxu0 %v54
    %76 = vmatprep.subr.mxu0 0.0
    %77 = vmatpush1.msra.mxu0 %v55
    %78 = vmatprep.subr.mxu0 0.0
    %79 = vmatpush1.msra.mxu0 %v56
    %80 = vmatprep.subr.mxu0 0.0
    %81 = vmatpush1.msra.mxu0 %v57
    %82 = vmatprep.subr.mxu0 0.0
    %83 = vmatpush1.msra.mxu0 %v58
    %84 = vmatprep.subr.mxu0 0.0
    %85 = vmatpush1.msra.mxu0 %v59
    %86 = vmatprep.subr.mxu0 0.0
    %87 = vmatpush1.msra.mxu0 %v60
    %88 = vmatprep.subr.mxu0 0.0
    %89 = vmatpush1.msra.mxu0 %v61
    %90 = vmatprep.subr.mxu0 0.0
    %91 = vmatpush1.msra.mxu0 %v62
    %92 = vmatprep.subr.mxu0 0.0
    %93 = vmatpush1.msra.mxu0 %v63
    %94 = vmatprep.subr.mxu0 0.0
    %95 = vmatpush1.msra.mxu0 %v64
    %96 = vmatprep.subr.mxu0 0.0
    %97 = vmatpush1.msra.mxu0 %v65
    %98 = vmatprep.subr.mxu0 0.0
    %99 = vmatpush1.msra.mxu0 %v66
    %100 = vmatprep.subr.mxu0 0.0
    %101 = vmatpush1.msra.mxu0 %v67
    %102 = vmatprep.subr.mxu0 0.0
    %103 = vmatpush1.msra.mxu0 %v68
    %104 = vmatprep.subr.mxu0 0.0
    %105 = vmatpush1.msra.mxu0 %v69
    %106 = vmatprep.subr.mxu0 0.0
    %107 = vmatpush1.msra.mxu0 0.0
    %108 = vmatprep.subr.mxu0 0.0
    %109 = vmatpush1.msra.mxu0 0.0
    %110 = vmatprep.subr.mxu0 0.0
    %111 = vmatpush1.msra.mxu0 0.0
    %112 = vmatprep.subr.mxu0 0.0
    %113 = vmatpush1.msra.mxu0 0.0
    %114 = vmatprep.subr.mxu0 0.0
    %115 = vmatpush1.msra.mxu0 0.0
    %116 = vmatprep.subr.mxu0 0.0
    %117 = vmatpush1.msra.mxu0 0.0
    %118 = vmatprep.subr.mxu0 0.0
    %119 = vmatpush1.msra.mxu0 0.0
    %120 = vmatprep.subr.mxu0 0.0
    %121 = vmatpush1.msra.mxu0 0.0
    %122 = vmatprep.subr.mxu0 0.0
    %123 = vmatpush1.msra.mxu0 0.0
    %124 = vmatprep.subr.mxu0 0.0
    %125 = vmatpush1.msra.mxu0 0.0
    %126 = vmatprep.subr.mxu0 0.0
    %127 = vmatpush1.msra.mxu0 0.0
    %128 = vmatprep.subr.mxu0 0.0
    %129 = vmatpush1.msra.mxu0 0.0
    %130 = vmatprep.subr.mxu0 0.0
    %131 = vmatpush1.msra.mxu0 0.0
    %132 = vmatprep.subr.mxu0 0.0
    %133 = vmatpush1.msra.mxu0 0.0
    %134 = vmatprep.subr.mxu0 0.0
    %135 = vmatpush1.msra.mxu0 0.0
    %136 = vmatprep.subr.mxu0 0.0
    %137 = vmatpush1.msra.mxu0 0.0
    %138 = vmatprep.mubr.f32.mxu0 0.0
    %139 = vmatmul.mubr.f32.gmra.mrb[0].mxu0 %v53
    %v140 = vpop.f32.mrb[0].mxu0
    %v141 = vadd.f32 %v73, %v140
    %v142 = vpop.f32.mrb[0].mxu0
    %143 = vdwg.mxu0
    %s144 = scalar_lea.vmem [#allocation5], 128
    %v145 = vld [vmem:[%s144] sm:$0xff]
    %v146 = vld [vmem:[%s144 + $0x8] sm:$0xff]
    %v147 = vld [vmem:[%s144 + $0x10] sm:$0xff]
    %v148 = vld [vmem:[%s144 + $0x18] sm:$0xff]
    %v149 = vld [vmem:[%s144 + $0x20] sm:$0xff]
    %v150 = vld [vmem:[%s144 + $0x28] sm:$0xff]
    %v151 = vld [vmem:[%s144 + $0x30] sm:$0xff]
    %v152 = vld [vmem:[%s144 + $0x38] sm:$0xff]
    %v153 = vld [vmem:[%s144 + $0x40] sm:$0xff]
    %v154 = vld [vmem:[%s144 + $0x48] sm:$0xff]
    %v155 = vld [vmem:[%s144 + $0x50] sm:$0xff]
    %v156 = vld [vmem:[%s144 + $0x58] sm:$0xff]
    %v157 = vld [vmem:[%s144 + $0x60] sm:$0xff]
    %v158 = vld [vmem:[%s144 + $0x68] sm:$0xff]
    %v159 = vld [vmem:[%s144 + $0x70] sm:$0xff]
    %v160 = vld [vmem:[%s144 + $0x78] sm:$0xff]
    %v161 = vlaneseq
    %v162 = vshrl.u32 %v161, 7
    %v163 = vsub.s32 1, %v162
    %v164 = vrot.slane %v52, %v163
    %165 = vmatprep.subr.mxu0 0.0
    %166 = vmatpush1.msra.mxu0 %v145
    %167 = vmatprep.subr.mxu0 0.0
    %168 = vmatpush1.msra.mxu0 %v146
    %169 = vmatprep.subr.mxu0 0.0
    %170 = vmatpush1.msra.mxu0 %v147
    %171 = vmatprep.subr.mxu0 0.0
    %172 = vmatpush1.msra.mxu0 %v148
    %173 = vmatprep.subr.mxu0 0.0
    %174 = vmatpush1.msra.mxu0 %v149
    %175 = vmatprep.subr.mxu0 0.0
    %176 = vmatpush1.msra.mxu0 %v150
    %177 = vmatprep.subr.mxu0 0.0
    %178 = vmatpush1.msra.mxu0 %v151
    %179 = vmatprep.subr.mxu0 0.0
    %180 = vmatpush1.msra.mxu0 %v152
    %181 = vmatprep.subr.mxu0 0.0
    %182 = vmatpush1.msra.mxu0 %v153
    %183 = vmatprep.subr.mxu0 0.0
    %184 = vmatpush1.msra.mxu0 %v154
    %185 = vmatprep.subr.mxu0 0.0
    %186 = vmatpush1.msra.mxu0 %v155
    %187 = vmatprep.subr.mxu0 0.0
    %188 = vmatpush1.msra.mxu0 %v156
    %189 = vmatprep.subr.mxu0 0.0
    %190 = vmatpush1.msra.mxu0 %v157
    %191 = vmatprep.subr.mxu0 0.0
    %192 = vmatpush1.msra.mxu0 %v158
    %193 = vmatprep.subr.mxu0 0.0
    %194 = vmatpush1.msra.mxu0 %v159
    %195 = vmatprep.subr.mxu0 0.0
    %196 = vmatpush1.msra.mxu0 %v160
    %197 = vmatprep.subr.mxu0 0.0
    %198 = vmatpush1.msra.mxu0 0.0
    %199 = vmatprep.subr.mxu0 0.0
    %200 = vmatpush1.msra.mxu0 0.0
    %201 = vmatprep.subr.mxu0 0.0
    %202 = vmatpush1.msra.mxu0 0.0
    %203 = vmatprep.subr.mxu0 0.0
    %204 = vmatpush1.msra.mxu0 0.0
    %205 = vmatprep.subr.mxu0 0.0
    %206 = vmatpush1.msra.mxu0 0.0
    %207 = vmatprep.subr.mxu0 0.0
    %208 = vmatpush1.msra.mxu0 0.0
    %209 = vmatprep.subr.mxu0 0.0
    %210 = vmatpush1.msra.mxu0 0.0
    %211 = vmatprep.subr.mxu0 0.0
    %212 = vmatpush1.msra.mxu0 0.0
    %213 = vmatprep.subr.mxu0 0.0
    %214 = vmatpush1.msra.mxu0 0.0
    %215 = vmatprep.subr.mxu0 0.0
    %216 = vmatpush1.msra.mxu0 0.0
    %217 = vmatprep.subr.mxu0 0.0
    %218 = vmatpush1.msra.mxu0 0.0
    %219 = vmatprep.subr.mxu0 0.0
    %220 = vmatpush1.msra.mxu0 0.0
    %221 = vmatprep.subr.mxu0 0.0
    %222 = vmatpush1.msra.mxu0 0.0
    %223 = vmatprep.subr.mxu0 0.0
    %224 = vmatpush1.msra.mxu0 0.0
    %225 = vmatprep.subr.mxu0 0.0
    %226 = vmatpush1.msra.mxu0 0.0
    %227 = vmatprep.subr.mxu0 0.0
    %228 = vmatpush1.msra.mxu0 0.0
    %229 = vmatprep.mubr.f32.mxu0 0.0
    %230 = vmatmul.mubr.f32.gmra.mrb[0].mxu0 %v141
    %v231 = vpop.f32.mrb[0].mxu0
    %v232 = vadd.f32 %v164, %v231
    %v233 = vpop.f32.mrb[0].mxu0
    %234 = vdwg.mxu0
    %v235 = vmax.f32 %v232, 0.0
    %s236 = scalar_lea.vmem [#allocation5], 256
    %v237 = vld [vmem:[%s236] sm:$0xff]
    %v238 = vld [vmem:[%s236 + $0x8] sm:$0xff]
    %v239 = vld [vmem:[%s236 + $0x10] sm:$0xff]
    %v240 = vld [vmem:[%s236 + $0x18] sm:$0xff]
    %v241 = vld [vmem:[%s236 + $0x20] sm:$0xff]
    %v242 = vld [vmem:[%s236 + $0x28] sm:$0xff]
    %v243 = vld [vmem:[%s236 + $0x30] sm:$0xff]
    %v244 = vld [vmem:[%s236 + $0x38] sm:$0xff]
    %v245 = vld [vmem:[%s236 + $0x40] sm:$0xff]
    %v246 = vld [vmem:[%s236 + $0x48] sm:$0xff]
    %v247 = vld [vmem:[%s236 + $0x50] sm:$0xff]
    %v248 = vld [vmem:[%s236 + $0x58] sm:$0xff]
    %v249 = vld [vmem:[%s236 + $0x60] sm:$0xff]
    %v250 = vld [vmem:[%s236 + $0x68] sm:$0xff]
    %v251 = vld [vmem:[%s236 + $0x70] sm:$0xff]
    %v252 = vld [vmem:[%s236 + $0x78] sm:$0xff]
    %v253 = vlaneseq
    %v254 = vshrl.u32 %v253, 7
    %v255 = vsub.s32 2, %v254
    %v256 = vrot.slane %v52, %v255
    %257 = vmatprep.subr.mxu0 0.0
    %258 = vmatpush1.msra.mxu0 %v237
    %259 = vmatprep.subr.mxu0 0.0
    %260 = vmatpush1.msra.mxu0 %v238
    %261 = vmatprep.subr.mxu0 0.0
    %262 = vmatpush1.msra.mxu0 %v239
    %263 = vmatprep.subr.mxu0 0.0
    %264 = vmatpush1.msra.mxu0 %v240
    %265 = vmatprep.subr.mxu0 0.0
    %266 = vmatpush1.msra.mxu0 %v241
    %267 = vmatprep.subr.mxu0 0.0
    %268 = vmatpush1.msra.mxu0 %v242
    %269 = vmatprep.subr.mxu0 0.0
    %270 = vmatpush1.msra.mxu0 %v243
    %271 = vmatprep.subr.mxu0 0.0
    %272 = vmatpush1.msra.mxu0 %v244
    %273 = vmatprep.subr.mxu0 0.0
    %274 = vmatpush1.msra.mxu0 %v245
    %275 = vmatprep.subr.mxu0 0.0
    %276 = vmatpush1.msra.mxu0 %v246
    %277 = vmatprep.subr.mxu0 0.0
    %278 = vmatpush1.msra.mxu0 %v247
    %279 = vmatprep.subr.mxu0 0.0
    %280 = vmatpush1.msra.mxu0 %v248
    %281 = vmatprep.subr.mxu0 0.0
    %282 = vmatpush1.msra.mxu0 %v249
    %283 = vmatprep.subr.mxu0 0.0
    %284 = vmatpush1.msra.mxu0 %v250
    %285 = vmatprep.subr.mxu0 0.0
    %286 = vmatpush1.msra.mxu0 %v251
    %287 = vmatprep.subr.mxu0 0.0
    %288 = vmatpush1.msra.mxu0 %v252
    %289 = vmatprep.subr.mxu0 0.0
    %290 = vmatpush1.msra.mxu0 0.0
    %291 = vmatprep.subr.mxu0 0.0
    %292 = vmatpush1.msra.mxu0 0.0
    %293 = vmatprep.subr.mxu0 0.0
    %294 = vmatpush1.msra.mxu0 0.0
    %295 = vmatprep.subr.mxu0 0.0
    %296 = vmatpush1.msra.mxu0 0.0
    %297 = vmatprep.subr.mxu0 0.0
    %298 = vmatpush1.msra.mxu0 0.0
    %299 = vmatprep.subr.mxu0 0.0
    %300 = vmatpush1.msra.mxu0 0.0
    %301 = vmatprep.subr.mxu0 0.0
    %302 = vmatpush1.msra.mxu0 0.0
    %303 = vmatprep.subr.mxu0 0.0
    %304 = vmatpush1.msra.mxu0 0.0
    %305 = vmatprep.subr.mxu0 0.0
    %306 = vmatpush1.msra.mxu0 0.0
    %307 = vmatprep.subr.mxu0 0.0
    %308 = vmatpush1.msra.mxu0 0.0
    %309 = vmatprep.subr.mxu0 0.0
    %310 = vmatpush1.msra.mxu0 0.0
    %311 = vmatprep.subr.mxu0 0.0
    %312 = vmatpush1.msra.mxu0 0.0
    %313 = vmatprep.subr.mxu0 0.0
    %314 = vmatpush1.msra.mxu0 0.0
    %315 = vmatprep.subr.mxu0 0.0
    %316 = vmatpush1.msra.mxu0 0.0
    %317 = vmatprep.subr.mxu0 0.0
    %318 = vmatpush1.msra.mxu0 0.0
    %319 = vmatprep.subr.mxu0 0.0
    %320 = vmatpush1.msra.mxu0 0.0
    %321 = vmatprep.mubr.f32.mxu0 0.0
    %322 = vmatmul.mubr.f32.gmra.mrb[0].mxu0 %v235
    %v323 = vpop.f32.mrb[0].mxu0
    %v324 = vadd.f32 %v256, %v323
    %v325 = vpop.f32.mrb[0].mxu0
    %326 = vdwg.mxu0
    %v327 = vmax.f32 %v324, 0.0
    %s328 = scalar_lea.vmem [#allocation5], 384
    %v329 = vld [vmem:[%s328] sm:$0xff]
    %v330 = vld [vmem:[%s328 + $0x8] sm:$0xff]
    %v331 = vld [vmem:[%s328 + $0x10] sm:$0xff]
    %v332 = vld [vmem:[%s328 + $0x18] sm:$0xff]
    %v333 = vld [vmem:[%s328 + $0x20] sm:$0xff]
    %v334 = vld [vmem:[%s328 + $0x28] sm:$0xff]
    %v335 = vld [vmem:[%s328 + $0x30] sm:$0xff]
    %v336 = vld [vmem:[%s328 + $0x38] sm:$0xff]
    %v337 = vld [vmem:[%s328 + $0x40] sm:$0xff]
    %v338 = vld [vmem:[%s328 + $0x48] sm:$0xff]
    %v339 = vld [vmem:[%s328 + $0x50] sm:$0xff]
    %v340 = vld [vmem:[%s328 + $0x58] sm:$0xff]
    %v341 = vld [vmem:[%s328 + $0x60] sm:$0xff]
    %v342 = vld [vmem:[%s328 + $0x68] sm:$0xff]
    %v343 = vld [vmem:[%s328 + $0x70] sm:$0xff]
    %v344 = vld [vmem:[%s328 + $0x78] sm:$0xff]
    %v345 = vlaneseq
    %v346 = vshrl.u32 %v345, 7
    %v347 = vsub.s32 3, %v346
    %v348 = vrot.slane %v52, %v347
    %349 = vmatprep.subr.mxu0 0.0
    %350 = vmatpush1.msra.mxu0 %v329
    %351 = vmatprep.subr.mxu0 0.0
    %352 = vmatpush1.msra.mxu0 %v330
    %353 = vmatprep.subr.mxu0 0.0
    %354 = vmatpush1.msra.mxu0 %v331
    %355 = vmatprep.subr.mxu0 0.0
    %356 = vmatpush1.msra.mxu0 %v332
    %357 = vmatprep.subr.mxu0 0.0
    %358 = vmatpush1.msra.mxu0 %v333
    %359 = vmatprep.subr.mxu0 0.0
    %360 = vmatpush1.msra.mxu0 %v334
    %361 = vmatprep.subr.mxu0 0.0
    %362 = vmatpush1.msra.mxu0 %v335
    %363 = vmatprep.subr.mxu0 0.0
    %364 = vmatpush1.msra.mxu0 %v336
    %365 = vmatprep.subr.mxu0 0.0
    %366 = vmatpush1.msra.mxu0 %v337
    %367 = vmatprep.subr.mxu0 0.0
    %368 = vmatpush1.msra.mxu0 %v338
    %369 = vmatprep.subr.mxu0 0.0
    %370 = vmatpush1.msra.mxu0 %v339
    %371 = vmatprep.subr.mxu0 0.0
    %372 = vmatpush1.msra.mxu0 %v340
    %373 = vmatprep.subr.mxu0 0.0
    %374 = vmatpush1.msra.mxu0 %v341
    %375 = vmatprep.subr.mxu0 0.0
    %376 = vmatpush1.msra.mxu0 %v342
    %377 = vmatprep.subr.mxu0 0.0
    %378 = vmatpush1.msra.mxu0 %v343
    %379 = vmatprep.subr.mxu0 0.0
    %380 = vmatpush1.msra.mxu0 %v344
    %381 = vmatprep.subr.mxu0 0.0
    %382 = vmatpush1.msra.mxu0 0.0
    %383 = vmatprep.subr.mxu0 0.0
    %384 = vmatpush1.msra.mxu0 0.0
    %385 = vmatprep.subr.mxu0 0.0
    %386 = vmatpush1.msra.mxu0 0.0
    %387 = vmatprep.subr.mxu0 0.0
    %388 = vmatpush1.msra.mxu0 0.0
    %389 = vmatprep.subr.mxu0 0.0
    %390 = vmatpush1.msra.mxu0 0.0
    %391 = vmatprep.subr.mxu0 0.0
    %392 = vmatpush1.msra.mxu0 0.0
    %393 = vmatprep.subr.mxu0 0.0
    %394 = vmatpush1.msra.mxu0 0.0
    %395 = vmatprep.subr.mxu0 0.0
    %396 = vmatpush1.msra.mxu0 0.0
    %397 = vmatprep.subr.mxu0 0.0
    %398 = vmatpush1.msra.mxu0 0.0
    %399 = vmatprep.subr.mxu0 0.0
    %400 = vmatpush1.msra.mxu0 0.0
    %401 = vmatprep.subr.mxu0 0.0
    %402 = vmatpush1.msra.mxu0 0.0
    %403 = vmatprep.subr.mxu0 0.0
    %404 = vmatpush1.msra.mxu0 0.0
    %405 = vmatprep.subr.mxu0 0.0
    %406 = vmatpush1.msra.mxu0 0.0
    %407 = vmatprep.subr.mxu0 0.0
    %408 = vmatpush1.msra.mxu0 0.0
    %409 = vmatprep.subr.mxu0 0.0
    %410 = vmatpush1.msra.mxu0 0.0
    %411 = vmatprep.subr.mxu0 0.0
    %412 = vmatpush1.msra.mxu0 0.0
    %413 = vmatprep.mubr.f32.mxu0 0.0
    %414 = vmatmul.mubr.f32.gmra.mrb[0].mxu0 %v327
    %v415 = vpop.f32.mrb[0].mxu0
    %v416 = vadd.f32 %v348, %v415
    %v417 = vpop.f32.mrb[0].mxu0
    %418 = vdwg.mxu0
    %v419 = vmax.f32 %v416, 0.0
    %s420 = scalar_lea.vmem [#allocation5], 512
    %v421 = vld [vmem:[%s420] sm:$0xff]
    %v422 = vld [vmem:[%s420 + $0x8] sm:$0xff]
    %v423 = vld [vmem:[%s420 + $0x10] sm:$0xff]
    %v424 = vld [vmem:[%s420 + $0x18] sm:$0xff]
    %v425 = vld [vmem:[%s420 + $0x20] sm:$0xff]
    %v426 = vld [vmem:[%s420 + $0x28] sm:$0xff]
    %v427 = vld [vmem:[%s420 + $0x30] sm:$0xff]
    %v428 = vld [vmem:[%s420 + $0x38] sm:$0xff]
    %v429 = vld [vmem:[%s420 + $0x40] sm:$0xff]
    %v430 = vld [vmem:[%s420 + $0x48] sm:$0xff]
    %v431 = vld [vmem:[%s420 + $0x50] sm:$0xff]
    %v432 = vld [vmem:[%s420 + $0x58] sm:$0xff]
    %v433 = vld [vmem:[%s420 + $0x60] sm:$0xff]
    %v434 = vld [vmem:[%s420 + $0x68] sm:$0xff]
    %v435 = vld [vmem:[%s420 + $0x70] sm:$0xff]
    %v436 = vld [vmem:[%s420 + $0x78] sm:$0xff]
    %v437 = vlaneseq
    %v438 = vshrl.u32 %v437, 7
    %v439 = vsub.s32 4, %v438
    %v440 = vrot.slane %v52, %v439
    %441 = vmatprep.subr.mxu0 0.0
    %442 = vmatpush1.msra.mxu0 %v421
    %443 = vmatprep.subr.mxu0 0.0
    %444 = vmatpush1.msra.mxu0 %v422
    %445 = vmatprep.subr.mxu0 0.0
    %446 = vmatpush1.msra.mxu0 %v423
    %447 = vmatprep.subr.mxu0 0.0
    %448 = vmatpush1.msra.mxu0 %v424
    %449 = vmatprep.subr.mxu0 0.0
    %450 = vmatpush1.msra.mxu0 %v425
    %451 = vmatprep.subr.mxu0 0.0
    %452 = vmatpush1.msra.mxu0 %v426
    %453 = vmatprep.subr.mxu0 0.0
    %454 = vmatpush1.msra.mxu0 %v427
    %455 = vmatprep.subr.mxu0 0.0
    %456 = vmatpush1.msra.mxu0 %v428
    %457 = vmatprep.subr.mxu0 0.0
    %458 = vmatpush1.msra.mxu0 %v429
    %459 = vmatprep.subr.mxu0 0.0
    %460 = vmatpush1.msra.mxu0 %v430
    %461 = vmatprep.subr.mxu0 0.0
    %462 = vmatpush1.msra.mxu0 %v431
    %463 = vmatprep.subr.mxu0 0.0
    %464 = vmatpush1.msra.mxu0 %v432
    %465 = vmatprep.subr.mxu0 0.0
    %466 = vmatpush1.msra.mxu0 %v433
    %467 = vmatprep.subr.mxu0 0.0
    %468 = vmatpush1.msra.mxu0 %v434
    %469 = vmatprep.subr.mxu0 0.0
    %470 = vmatpush1.msra.mxu0 %v435
    %471 = vmatprep.subr.mxu0 0.0
    %472 = vmatpush1.msra.mxu0 %v436
    %473 = vmatprep.subr.mxu0 0.0
    %474 = vmatpush1.msra.mxu0 0.0
    %475 = vmatprep.subr.mxu0 0.0
    %476 = vmatpush1.msra.mxu0 0.0
    %477 = vmatprep.subr.mxu0 0.0
    %478 = vmatpush1.msra.mxu0 0.0
    %479 = vmatprep.subr.mxu0 0.0
    %480 = vmatpush1.msra.mxu0 0.0
    %481 = vmatprep.subr.mxu0 0.0
    %482 = vmatpush1.msra.mxu0 0.0
    %483 = vmatprep.subr.mxu0 0.0
    %484 = vmatpush1.msra.mxu0 0.0
    %485 = vmatprep.subr.mxu0 0.0
    %486 = vmatpush1.msra.mxu0 0.0
    %487 = vmatprep.subr.mxu0 0.0
    %488 = vmatpush1.msra.mxu0 0.0
    %489 = vmatprep.subr.mxu0 0.0
    %490 = vmatpush1.msra.mxu0 0.0
    %491 = vmatprep.subr.mxu0 0.0
    %492 = vmatpush1.msra.mxu0 0.0
    %493 = vmatprep.subr.mxu0 0.0
    %494 = vmatpush1.msra.mxu0 0.0
    %495 = vmatprep.subr.mxu0 0.0
    %496 = vmatpush1.msra.mxu0 0.0
    %497 = vmatprep.subr.mxu0 0.0
    %498 = vmatpush1.msra.mxu0 0.0
    %499 = vmatprep.subr.mxu0 0.0
    %500 = vmatpush1.msra.mxu0 0.0
    %501 = vmatprep.subr.mxu0 0.0
    %502 = vmatpush1.msra.mxu0 0.0
    %503 = vmatprep.subr.mxu0 0.0
    %504 = vmatpush1.msra.mxu0 0.0
    %505 = vmatprep.mubr.f32.mxu0 0.0
    %506 = vmatmul.mubr.f32.gmra.mrb[0].mxu0 %v419
    %v507 = vpop.f32.mrb[0].mxu0
    %v508 = vadd.f32 %v440, %v507
    %v509 = vpop.f32.mrb[0].mxu0
    %510 = vdwg.mxu0
    %511 = vst [vmem:[#allocation8] sm:$0xff] %v508
    // Predicated region
    $region26: #{tpu_custom_call.1} parent=1 // pred_check
      _
    $region27: #{tpu_custom_call.1} parent=1 // pred_check_branch
      %513 = sbr.rel (0) target = $region29
    $region28: #{tpu_custom_call.1} parent=1 // pred_region
      %s515 = ssub.s32 128, 128
      %516 = vsyncadd [#allocation4], %s515
      %s518 = sshll.u32 [#allocation8], 4
      %s519 = int_to_ptr.vmem [resolvable:$true] %s518
      %521 = dma.vmem_to_hbm [thread:$0]  %s519, 128, %s3, [#allocation4]
    $region29: #{tpu_custom_call.1} parent=1 // pred_fallthru
      _
    // Predicated region
    $region30: #{tpu_custom_call.1} parent=1 // pred_check
      _
    $region31: #{tpu_custom_call.1} parent=1 // pred_check_branch
      %523 = sbr.rel (0) target = $region33
    $region32: #{tpu_custom_call.1} parent=1 // pred_region
      %524 = dma.done [#allocation4], 128
    $region33: #{tpu_custom_call.1} parent=1 // pred_fallthru
      _
    %525 = vsyncpa [#allocation3], 1
    %526 = vsyncpa [#allocation6], 1
    %527 = vsyncpa [#allocation4], 1

</llo_original>
